<compile_context>
chip_gen: v5e
topology: v5e:2x2
jax: 0.10.0
libtpu: 0.0.40
codegen_flags: <defaults>
</compile_context>

<pallas_src>
import functools

import numpy as np

import jax
import jax.numpy as jnp
from jax import lax
from jax.experimental import pallas as pl
from jax.experimental.pallas import tpu as pltpu

_LANE = 128
_SUBLANE = 8


def _round_up(x, m):
    return -(-x // m) * m


def _pairsum_gather_kernel(idx_ref, tsum_ref, o_ref, *, sub):
    """out[r, :] = tsum[idx[r, 0], :] via a single-compare one-hot MXU matmul.

    The block is processed in fixed-size row chunks so the iota / one-hot
    intermediates stay O(sub * vocab) no matter how large the block is.
    """
    vocab = tsum_ref.shape[0]
    rows = o_ref.shape[0]                       # multiple of `sub` by construction
    tsum = tsum_ref[...]                        # (vocab, U) -- small, loaded once

    def body(c, carry):
        r0 = pl.multiple_of(c * sub, _SUBLANE)
        idx = idx_ref[pl.ds(r0, sub), :]                          # (sub, 1) int32
        col = lax.broadcasted_iota(jnp.int32, (sub, vocab), 1)    # lane iota
        onehot = (col == idx).astype(tsum.dtype)                  # ONE compare
        o_ref[pl.ds(r0, sub), :] = jnp.dot(
            onehot, tsum, preferred_element_type=jnp.float32).astype(o_ref.dtype)
        return carry

    lax.fori_loop(0, rows // sub, body, 0)


def _choose_tiling(rows_total, U, vocab_pad, itemsize):
    """Row tiling (independent of Lk) with honest VMEM accounting."""
    rows8 = _round_up(rows_total, _SUBLANE)
    out_lane_bytes = _round_up(U, _LANE) * itemsize       # lane-padded out row in VMEM

    # Inner chunk bounds the iota + one-hot + dot-result temporaries to ~4 MiB.
    row_chunk_bytes = 2 * vocab_pad * 4 + _round_up(U, _LANE) * 4
    sub = min(512, max(_SUBLANE, (4 << 20) // row_chunk_bytes // _SUBLANE * _SUBLANE))
    sub = min(sub, rows8)

    # Per block row, double-buffered: lane-padded (rows,1) int32 idx + out block.
    per_row = 2 * (out_lane_bytes + _LANE * 4)
    table_bytes = 2 * vocab_pad * _round_up(U, _LANE) * itemsize
    budget = 16 << 20                                     # well under vmem_limit_bytes
    avail = max(budget - table_bytes - sub * row_chunk_bytes, per_row * sub)
    rows_blk = max(sub, avail // per_row // sub * sub)

    # Keep >= 2 grid blocks once the output is non-trivial (v7x dual TensorCores).
    if rows_total > 2 * sub:
        rows_blk = min(rows_blk, _round_up(-(-rows_total // 2), sub))
    rows_blk = min(rows_blk, _round_up(rows8, sub))
    num_blocks = -(-rows_total // rows_blk)
    return sub, rows_blk, num_blocks


def elastic_relative_position_2d(table_v, table_h, length_q, length_k,
                                 max_relative_position, *, use_pallas=None):
    """Pallas implementation of ElasticRelativePosition2D.forward(length_q, length_k)."""
    V, U = table_v.shape
    assert table_h.shape == (V, U)
    assert V == 2 * max_relative_position + 2
    Lq, Lk = int(length_q), int(length_k)
    assert Lq >= 1 and Lk >= 1
    m = int(max_relative_position)
    itemsize = jnp.dtype(table_v.dtype).itemsize

    # ---- trace-time index precompute (mirrors the PyTorch forward exactly) -------
    lq, lk = Lq - 1, Lk - 1
    if lq > 0 and lk > 0:
        s = int(lq ** 0.5)        # module convention: float-sqrt truncation
        rq = np.arange(lq, dtype=np.int64)
        rk = np.arange(lk, dtype=np.int64)
        dv = rk[None, :] // s - rq[:, None] // s
        dh = rk[None, :] % s - rq[:, None] % s
        fv = np.clip(dv, -m, m) + m + 1
        fh = np.clip(dh, -m, m) + m + 1
        fv = np.pad(fv, ((1, 0), (1, 0)), constant_values=0)
        fh = np.pad(fh, ((1, 0), (1, 0)), constant_values=0)
    else:
        # Degenerate length_q == 1 or length_k == 1: every entry maps to the padded
        # index 0 (the reference would divide by zero / be empty here).
        fv = np.zeros((Lq, Lk), dtype=np.int64)
        fh = np.zeros((Lq, Lk), dtype=np.int64)

    rows_total = Lq * Lk
    vocab = V * V

    # Tiny outputs are pure launch/pipeline overhead for a Pallas kernel; very large
    # V*V would make the one-hot width (and tsum) unreasonable.  Use XLA there.
    if use_pallas is None:
        use_pallas = rows_total * U * itemsize >= (256 << 10)
    if (not use_pallas) or vocab > 4096:
        # TODO(synk): for very large max_relative_position a dual-table (2V-wide)
        # one-hot kernel would be preferable to the fused V*V table.
        return table_v[jnp.asarray(fv, jnp.int32)] + table_h[jnp.asarray(fh, jnp.int32)]

    # ---- fused gather: pairwise-sum table + single flat index --------------------
    # tsum[i*V + j] = table_v[i] + table_h[j]  => one compare per one-hot row and no
    # index-collision hazard (each (i, j) pair owns its own table row).
    vocab_pad = _round_up(vocab, _LANE)
    tsum = (table_v[:, None, :] + table_h[None, :, :]).reshape(vocab, U)
    if vocab_pad != vocab:
        tsum = jnp.pad(tsum, ((0, vocab_pad - vocab), (0, 0)))

    cidx = (fv * V + fh).reshape(-1).astype(np.int32)

    sub, rows_blk, num_blocks = _choose_tiling(rows_total, U, vocab_pad, itemsize)
    rows_pad = num_blocks * rows_blk
    if rows_pad != rows_total:
        # Pad the host-side index stream so trailing-block reads stay in bounds; the
        # out-of-range rows of the last OUTPUT block are simply not written back.
        cidx = np.concatenate([cidx, np.zeros(rows_pad - rows_total, np.int32)])
    idx = jnp.asarray(cidx.reshape(rows_pad, 1))

    # Output is written at its true width U (block last dim == full array dim), so
    # there is no pad-to-128 + post-kernel slice; the final reshape is free.
    out2d = pl.pallas_call(
        functools.partial(_pairsum_gather_kernel, sub=sub),
        out_shape=jax.ShapeDtypeStruct((rows_total, U), table_v.dtype),
        grid=(num_blocks,),
        in_specs=[
            pl.BlockSpec((rows_blk, 1), lambda i: (i, 0)),         # fused indices
            pl.BlockSpec((vocab_pad, U), lambda i: (0, 0)),        # pairwise-sum table
        ],
        out_specs=pl.BlockSpec((rows_blk, U), lambda i: (i, 0)),
        compiler_params=pltpu.CompilerParams(
            dimension_semantics=("parallel",),
            vmem_limit_bytes=32 * 1024 * 1024,                     # v5e default is 16 MiB
        ),
    )(idx, tsum)

    return out2d.reshape(Lq, Lk, U)


def _reference(table_v, table_h, length_q, length_k, max_relative_position):
    """Pure-JAX reference mirroring the PyTorch forward."""
    lq = length_q - 1
    lk = length_k - 1
    m = max_relative_position
    if lq > 0 and lk > 0:
        s = int(lq ** 0.5)
        rq = jnp.arange(lq)
        rk = jnp.arange(lk)
        dv = rk[None, :] // s - rq[:, None] // s
        dh = rk[None, :] % s - rq[:, None] % s
        fv = jnp.clip(dv, -m, m) + m + 1
        fh = jnp.clip(dh, -m, m) + m + 1
        fv = jnp.pad(fv, ((1, 0), (1, 0)), constant_values=0)
        fh = jnp.pad(fh, ((1, 0), (1, 0)), constant_values=0)
    else:
        fv = jnp.zeros((length_q, length_k), jnp.int32)
        fh = jnp.zeros((length_q, length_k), jnp.int32)
    return table_v[fv] + table_h[fh]


if __name__ == "__main__":
    # Module hyper-params (synthetic, deterministic init).
    max_relative_position = 4
    num_units = 64
    V = max_relative_position * 2 + 2            # 10 table rows

    key = jax.random.PRNGKey(0)
    kv, kh = jax.random.split(key)
    embeddings_table_v = 0.02 * jax.random.normal(kv, (V, num_units), jnp.float32)
    embeddings_table_h = 0.02 * jax.random.normal(kh, (V, num_units), jnp.float32)

    # 1) Main case: 8x8 patch grid + class token -> Pallas path
    #    (2 grid blocks, partial trailing block, lane-masked U=64 stores).
    length_q = length_k = 65
    out = elastic_relative_position_2d(
        embeddings_table_v, embeddings_table_h,
        length_q, length_k, max_relative_position)
    out = jax.block_until_ready(out)
    ref = _reference(embeddings_table_v, embeddings_table_h,
                     length_q, length_k, max_relative_position)
    assert out.shape == (length_q, length_k, num_units), out.shape
    assert jnp.allclose(out, ref, atol=1e-6, rtol=1e-6), "mismatch (pallas, 65x65)"

    # 2) Tiny case, forced through the Pallas kernel (single partial block).
    out_small = elastic_relative_position_2d(
        embeddings_table_v, embeddings_table_h,
        17, 17, max_relative_position, use_pallas=True)
    out_small = jax.block_until_ready(out_small)
    ref_small = _reference(embeddings_table_v, embeddings_table_h,
                           17, 17, max_relative_position)
    assert jnp.allclose(out_small, ref_small, atol=1e-6, rtol=1e-6), \
        "mismatch (pallas, 17x17)"

    # 3) Tiny case on the auto path (XLA gather+add fallback).
    out_xla = elastic_relative_position_2d(
        embeddings_table_v, embeddings_table_h,
        17, 17, max_relative_position)
    out_xla = jax.block_until_ready(out_xla)
    assert jnp.allclose(out_xla, ref_small, atol=1e-6, rtol=1e-6), "mismatch (xla)"

    # 4) Degenerate length_q == 1 (s == 0 guard; maps to the padded index 0).
    out_deg = elastic_relative_position_2d(
        embeddings_table_v, embeddings_table_h,
        1, 17, max_relative_position)
    out_deg = jax.block_until_ready(out_deg)
    ref_deg = _reference(embeddings_table_v, embeddings_table_h,
                         1, 17, max_relative_position)
    assert jnp.allclose(out_deg, ref_deg, atol=1e-6, rtol=1e-6), "mismatch (Lq==1)"

    print("KERNEL_OK")
</pallas_src>

<mosaic_0001>
module attributes {stable_mosaic.version = 11 : i64} {
  func.func @_pairsum_gather_kernel(%arg0: i32, %arg1: memref<2560x1xi32, #tpu.memory_space<vmem>>, %arg2: memref<128x64xf32, #tpu.memory_space<vmem>>, %arg3: memref<2560x64xf32, #tpu.memory_space<vmem>>) attributes {dimension_semantics = [#tpu.dimension_semantics<parallel>], iteration_bounds = array<i64: 2>, scalar_prefetch = 0 : i64, scratch_operands = 0 : i64, tpu.core_type = #tpu.core_type<tc>, window_params = [{transform_indices = @transform_0, window_bounds = array<i64: 2560, 1>}, {pipeline_mode = #tpu.pipeline_mode<synchronous>, transform_indices = @transform_1, window_bounds = array<i64: 128, 64>}, {transform_indices = @transform_2, window_bounds = array<i64: 2560, 64>}]} {
    %c0 = arith.constant 0 : index
    %c0_0 = arith.constant 0 : index
    %0 = vector.load %arg2[%c0, %c0_0] : memref<128x64xf32, #tpu.memory_space<vmem>>, vector<128x64xf32>
    %c0_i32 = arith.constant 0 : i32
    %c5_i32 = arith.constant 5 : i32
    %1 = arith.addi %c0_i32, %c5_i32 : i32
    %c1_i32 = arith.constant 1 : i32
    scf.for %arg4 = %c0_i32 to %1 step %c1_i32  : i32 {
      %c512_i32 = arith.constant 512 : i32
      %2 = arith.muli %arg4, %c512_i32 : i32
      %3 = tpu.assume_multiple %2, 8 : i32
      %4 = arith.index_cast %3 : i32 to index
      %c0_2 = arith.constant 0 : index
      %5 = vector.load %arg1[%4, %c0_2] : memref<2560x1xi32, #tpu.memory_space<vmem>>, vector<512x1xi32>
      %6 = tpu.iota {dimensions = array<i32: 1>} : vector<512x128xi32>
      %7 = vector.broadcast %5 : vector<512x1xi32> to vector<512x128xi32>
      %8 = arith.cmpi eq, %6, %7 : vector<512x128xi32>
      %9 = arith.extui %8 : vector<512x128xi1> to vector<512x128xi32>
      %10 = arith.sitofp %9 : vector<512x128xi32> to vector<512x128xf32>
      %cst = arith.constant dense<0.000000e+00> : vector<512x64xf32>
      %11 = tpu.matmul %10, %0, %cst {dimension_numbers = #tpu.dot_dimension_numbers<[1], [0], [0], [1], [0, 0, 1, 1], [], []>} : vector<512x128xf32>, vector<128x64xf32>, vector<512x64xf32> -> vector<512x64xf32>
      %12 = arith.index_cast %3 : i32 to index
      %c0_3 = arith.constant 0 : index
      %13 = vector.load %arg3[%12, %c0_3] : memref<2560x64xf32, #tpu.memory_space<vmem>>, vector<512x64xf32>
      tpu.vector_store %arg3[%12, %c0_3], %11 {strides = array<i32>} : memref<2560x64xf32, #tpu.memory_space<vmem>>, vector<512x64xf32>,
    }
    %c5_i32_1 = arith.constant 5 : i32
    return
  }
  func.func @transform_0(%arg0: i32) -> (i32, i32) {
    %c0_i32 = arith.constant 0 : i32
    %c0_i32_0 = arith.constant 0 : i32
    return %arg0, %c0_i32 : i32, i32
  }
  func.func @transform_1(%arg0: i32) -> (i32, i32) {
    %c0_i32 = arith.constant 0 : i32
    %c0_i32_0 = arith.constant 0 : i32
    %c0_i32_1 = arith.constant 0 : i32
    return %c0_i32, %c0_i32_0 : i32, i32
  }
  func.func @transform_2(%arg0: i32) -> (i32, i32) {
    %c0_i32 = arith.constant 0 : i32
    %c0_i32_0 = arith.constant 0 : i32
    return %arg0, %c0_i32 : i32, i32
  }
}

</mosaic_0001>

<llo_original>
// kernel: tpu_custom_call.1
$region0: #{tpu_custom_call.1}
  #allocation0 [shape = 'u32[]', space=smem, size = 0x4, offset = 0x4, fixed_abs, tag = 'smem constant byte address 0x4 - core index']
  #allocation1 [shape = 'u32[72,128]{1,0:T(1,128)}', space=vmem, size = 0x9000, scoped, tag = 'internal scratch']
  %s0 = inlined_call_operand.vmem [shape: s32[5120,1], index: 0, kind: input, shape index: {}]
  %s1 = inlined_call_operand.vmem [shape: f32[128,64], index: 1, kind: input, shape index: {}]
  %s2 = inlined_call_operand.vmem [shape: f32[4225,64], index: 2, kind: output, shape index: {}]
  %s3 = sld [smem:[#allocation0]]
  $region96: #{tpu_custom_call.1} parent=0
    _
  %s5 = ssub.s32 1, %s3
  %s6 = scalar_select 0, %s5, %s3
  $region1: #{tpu_custom_call.1} parent=0
    #allocation2 [shape = 'u8[2621440]{0}', space=vmem, size = 0x280000, scoped, tag = 'output window, operand 0']
    loop: start=0, step=1, limit=4
    $region2: #{tpu_custom_call.1} parent=1 // loop_pre_header
      _
    $region3: #{tpu_custom_call.1} parent=1 // loop_header
      %s8 = sphi 0, %s12
      %p9 = scmp.ge.s32.totalorder %s8, 4
      %s18 = sphi 0, %s20
      %s21 = sphi 0, %s18
      %s22 = sphi 0, %s21
      %s38 = sphi 0, %s22
      %s42 = sphi 0, %s42
      %s44 = sphi 0, %s42
      %s45 = sphi 0, %s44
      %s59 = sphi 0, %s45
      %s65 = sphi 0, %s67
      %s68 = sphi 0, %s65
      %s69 = sphi 0, %s68
      %s85 = sphi 0, %s69
    $region4: #{tpu_custom_call.1} parent=1 // loop_header_branch
      %11 = sbr.rel (%p9) target = $region8
    $region5: #{tpu_custom_call.1} parent=1 // loop_body
      %s13 = ssub.s32 %s8, 1
      %s14 = ssub.s32 %s8, 2
      %s15 = sadd.s32 %s8, 1
      %s16 = ssub.s32 %s8, %s15
      %p17 = scmp.eq.s32.totalorder %s16, 0
      %s19 = sadd.s32 %s18, 1
      %s20 = scalar_select %p17, %s18, %s19
      %p23 = pneg %p17
      %p24 = scmp.eq.s32.totalorder %s8, 1
      %p25 = por %p23, %p24
      %p26 = scmp.ne.s32.totalorder %s18, %s21
      %p27 = scmp.eq.s32.totalorder %s8, 0
      %p28 = por %p26, %p27
      %p29 = scmp.ne.s32.totalorder %s18, %s21
      %p30 = scmp.eq.s32.totalorder %s13, 1
      %p31 = por %p29, %p30
      %p32 = scmp.ne.s32.totalorder %s21, %s22
      %p33 = scmp.eq.s32.totalorder %s13, 0
      %p34 = por %p32, %p33
      %p35 = scmp.ne.s32.totalorder %s21, %s22
      %p36 = scmp.eq.s32.totalorder %s14, 1
      %p37 = por %p35, %p36
      %p39 = scmp.ne.s32.totalorder %s22, %s38
      %p40 = scmp.eq.s32.totalorder %s14, 0
      %p41 = por %p39, %p40
      %s43 = sadd.s32 %s42, 1
      %p46 = scmp.eq.s32.totalorder %s8, 1
      %p47 = scmp.ne.s32.totalorder %s42, %s44
      %p48 = scmp.eq.s32.totalorder %s8, 0
      %p49 = por %p47, %p48
      %p50 = scmp.ne.s32.totalorder %s42, %s44
      %p51 = scmp.eq.s32.totalorder %s13, 1
      %p52 = por %p50, %p51
      %p53 = scmp.ne.s32.totalorder %s44, %s45
      %p54 = scmp.eq.s32.totalorder %s13, 0
      %p55 = por %p53, %p54
      %p56 = scmp.ne.s32.totalorder %s44, %s45
      %p57 = scmp.eq.s32.totalorder %s14, 1
      %p58 = por %p56, %p57
      %p60 = scmp.ne.s32.totalorder %s45, %s59
      %p61 = scmp.eq.s32.totalorder %s14, 0
      %p62 = por %p60, %p61
      %s63 = ssub.s32 %s8, %s15
      %p64 = scmp.eq.s32.totalorder %s63, 0
      %s66 = sadd.s32 %s65, 1
      %s67 = scalar_select %p64, %s65, %s66
      %p70 = pneg %p64
      %p71 = scmp.eq.s32.totalorder %s8, 1
      %p72 = por %p70, %p71
      %p73 = scmp.ne.s32.totalorder %s65, %s68
      %p74 = scmp.eq.s32.totalorder %s8, 0
      %p75 = por %p73, %p74
      %p76 = scmp.ne.s32.totalorder %s65, %s68
      %p77 = scmp.eq.s32.totalorder %s13, 1
      %p78 = por %p76, %p77
      %p79 = scmp.ne.s32.totalorder %s68, %s69
      %p80 = scmp.eq.s32.totalorder %s13, 0
      %p81 = por %p79, %p80
      %p82 = scmp.ne.s32.totalorder %s68, %s69
      %p83 = scmp.eq.s32.totalorder %s14, 1
      %p84 = por %p82, %p83
      %p86 = scmp.ne.s32.totalorder %s69, %s85
      %p87 = scmp.eq.s32.totalorder %s14, 0
      %p88 = por %p86, %p87
      %p89 = scmp.le.s32.totalorder 1, %s8
      %p90 = scmp.lt.s32.totalorder %s8, 3
      %p91 = pnand %p89, %p90
      %p92 = pneg %p91
      // Predicated region
      $region9: #{tpu_custom_call.1} parent=5 // pred_check
        _
      $region10: #{tpu_custom_call.1} parent=5 // pred_check_branch
        %94 = sbr.rel (%p91) target = $region12
      $region11: #{tpu_custom_call.1} parent=5 // pred_region
        %s95 = ssub.s32 %s8, 1
        // Predicated region
        $region13: #{tpu_custom_call.1} parent=11 // pred_check
          %p96 = pneg %p55
        $region14: #{tpu_custom_call.1} parent=11 // pred_check_branch
          %98 = sbr.rel (%p96) target = $region16
        $region15: #{tpu_custom_call.1} parent=11 // pred_region
          _
        $region16: #{tpu_custom_call.1} parent=11 // pred_fallthru
          _
      $region12: #{tpu_custom_call.1} parent=5 // pred_fallthru
        _
      %p99 = scmp.lt.s32.totalorder %s8, 2
      // Predicated region
      $region17: #{tpu_custom_call.1} parent=5 // pred_check
        %p100 = pneg %p99
      $region18: #{tpu_custom_call.1} parent=5 // pred_check_branch
        %102 = sbr.rel (%p100) target = $region20
      $region19: #{tpu_custom_call.1} parent=5 // pred_region
        // Predicated region
        $region21: #{tpu_custom_call.1} parent=19 // pred_check
          %p103 = pneg %p28
        $region22: #{tpu_custom_call.1} parent=19 // pred_check_branch
          %105 = sbr.rel (%p103) target = $region24
        $region23: #{tpu_custom_call.1} parent=19 // pred_region
          %s106 = smul.u32 320, %s8
          %p107 = scmp.lt.s32.totalorder %s106, 639
          %s108 = scalar_select %p107, %s106, 639
          %s109 = smul.addr %s108, 8
          %s110 = scalar_lea.vmem %s0, %s109
          %s111 = smul.u32 320, %s8
        $region24: #{tpu_custom_call.1} parent=19 // pred_fallthru
          _
      $region20: #{tpu_custom_call.1} parent=5 // pred_fallthru
        _
      %p112 = scmp.le.s32.totalorder 1, %s8
      %p113 = scmp.lt.s32.totalorder %s8, 3
      %p114 = pnand %p112, %p113
      %p115 = pneg %p114
      // Predicated region
      $region25: #{tpu_custom_call.1} parent=5 // pred_check
        _
      $region26: #{tpu_custom_call.1} parent=5 // pred_check_branch
        %117 = sbr.rel (%p114) target = $region28
      $region27: #{tpu_custom_call.1} parent=5 // pred_region
        %s118 = ssub.s32 %s8, 1
        %s119 = smul.u32 320, %s13
        %p120 = scmp.lt.s32.totalorder %s119, 639
        %s121 = scalar_select %p120, %s119, 639
        %s122 = smul.addr %s121, 8
        %s123 = scalar_lea.vmem %s0, %s122
        %p124 = pneg %p34
        %p125 = pneg %p31
        %p126 = pneg %p55
        %p127 = pneg %p52
        %p128 = pneg %p81
        %p129 = pneg %p78
        %s130 = sand.u32 %s68, 1
        %s131 = sand.u32 %s68, 1
        %s132 = smul.addr %s131, 2560
        %s133 = scalar_lea.vmem [#allocation2], %s132
        %s134 = smul.u32 320, %s13
        %p135 = scmp.lt.s32.totalorder %s134, 639
        %s136 = scalar_select %p135, %s134, 639
        %s137 = smul.addr %s136, 8
        %s138 = scalar_lea.vmem %s0, %s137
        %s139 = smul.u32 320, %s13
        %s140 = smul.u32 320, %s13
        %s141 = ssub.s32 529, %s140
        %p142 = scmp.lt.s32.totalorder %s141, 320
        %s143 = scalar_select %p142, %s141, 320
        %s144 = smul.u32 8, %s143
        %v145 = vld [vmem:[%s1] sm:$0xff]
        %v146 = vld [vmem:[%s1 + $0x8] sm:$0xff]
        %v147 = vld [vmem:[%s1 + $0x10] sm:$0xff]
        %v148 = vld [vmem:[%s1 + $0x18] sm:$0xff]
        %v149 = vld [vmem:[%s1 + $0x20] sm:$0xff]
        %v150 = vld [vmem:[%s1 + $0x28] sm:$0xff]
        %v151 = vld [vmem:[%s1 + $0x30] sm:$0xff]
        %v152 = vld [vmem:[%s1 + $0x38] sm:$0xff]
        %v153 = vld [vmem:[%s1 + $0x40] sm:$0xff]
        %v154 = vld [vmem:[%s1 + $0x48] sm:$0xff]
        %v155 = vld [vmem:[%s1 + $0x50] sm:$0xff]
        %v156 = vld [vmem:[%s1 + $0x58] sm:$0xff]
        %v157 = vld [vmem:[%s1 + $0x60] sm:$0xff]
        %v158 = vld [vmem:[%s1 + $0x68] sm:$0xff]
        %v159 = vld [vmem:[%s1 + $0x70] sm:$0xff]
        %v160 = vld [vmem:[%s1 + $0x78] sm:$0xff]
        loop: start=0, step=1, limit=5
        $region29: #{tpu_custom_call.1} parent=27 // loop_pre_header
          _
        $region30: #{tpu_custom_call.1} parent=27 // loop_header
          %s162 = sphi 0, %s166
          %p163 = scmp.ge.s32.totalorder %s162, 5
        $region31: #{tpu_custom_call.1} parent=27 // loop_header_branch
          %165 = sbr.rel (%p163) target = $region35
        $region32: #{tpu_custom_call.1} parent=27 // loop_body
          %s167 = smul.u32 %s162, 512
          %s168 = scalar_lea.vmem %s138, %s167
          %v169 = vld [vmem:[%s168] sm:$0xff]
          %v170 = vld [vmem:[%s168 + $0x8] sm:$0xff]
          %v171 = vld [vmem:[%s168 + $0x10] sm:$0xff]
          %v172 = vld [vmem:[%s168 + $0x18] sm:$0xff]
          %v173 = vld [vmem:[%s168 + $0x20] sm:$0xff]
          %v174 = vld [vmem:[%s168 + $0x28] sm:$0xff]
          %v175 = vld [vmem:[%s168 + $0x30] sm:$0xff]
          %v176 = vld [vmem:[%s168 + $0x38] sm:$0xff]
          %v177 = vld [vmem:[%s168 + $0x40] sm:$0xff]
          %v178 = vld [vmem:[%s168 + $0x48] sm:$0xff]
          %v179 = vld [vmem:[%s168 + $0x50] sm:$0xff]
          %v180 = vld [vmem:[%s168 + $0x58] sm:$0xff]
          %v181 = vld [vmem:[%s168 + $0x60] sm:$0xff]
          %v182 = vld [vmem:[%s168 + $0x68] sm:$0xff]
          %v183 = vld [vmem:[%s168 + $0x70] sm:$0xff]
          %v184 = vld [vmem:[%s168 + $0x78] sm:$0xff]
          %v185 = vld [vmem:[%s168 + $0x80] sm:$0xff]
          %v186 = vld [vmem:[%s168 + $0x88] sm:$0xff]
          %v187 = vld [vmem:[%s168 + $0x90] sm:$0xff]
          %v188 = vld [vmem:[%s168 + $0x98] sm:$0xff]
          %v189 = vld [vmem:[%s168 + $0xa0] sm:$0xff]
          %v190 = vld [vmem:[%s168 + $0xa8] sm:$0xff]
          %v191 = vld [vmem:[%s168 + $0xb0] sm:$0xff]
          %v192 = vld [vmem:[%s168 + $0xb8] sm:$0xff]
          %v193 = vld [vmem:[%s168 + $0xc0] sm:$0xff]
          %v194 = vld [vmem:[%s168 + $0xc8] sm:$0xff]
          %v195 = vld [vmem:[%s168 + $0xd0] sm:$0xff]
          %v196 = vld [vmem:[%s168 + $0xd8] sm:$0xff]
          %v197 = vld [vmem:[%s168 + $0xe0] sm:$0xff]
          %v198 = vld [vmem:[%s168 + $0xe8] sm:$0xff]
          %v199 = vld [vmem:[%s168 + $0xf0] sm:$0xff]
          %v200 = vld [vmem:[%s168 + $0xf8] sm:$0xff]
          %v201 = vld [vmem:[%s168 + $0x100] sm:$0xff]
          %v202 = vld [vmem:[%s168 + $0x108] sm:$0xff]
          %v203 = vld [vmem:[%s168 + $0x110] sm:$0xff]
          %v204 = vld [vmem:[%s168 + $0x118] sm:$0xff]
          %v205 = vld [vmem:[%s168 + $0x120] sm:$0xff]
          %v206 = vld [vmem:[%s168 + $0x128] sm:$0xff]
          %v207 = vld [vmem:[%s168 + $0x130] sm:$0xff]
          %v208 = vld [vmem:[%s168 + $0x138] sm:$0xff]
          %v209 = vld [vmem:[%s168 + $0x140] sm:$0xff]
          %v210 = vld [vmem:[%s168 + $0x148] sm:$0xff]
          %v211 = vld [vmem:[%s168 + $0x150] sm:$0xff]
          %v212 = vld [vmem:[%s168 + $0x158] sm:$0xff]
          %v213 = vld [vmem:[%s168 + $0x160] sm:$0xff]
          %v214 = vld [vmem:[%s168 + $0x168] sm:$0xff]
          %v215 = vld [vmem:[%s168 + $0x170] sm:$0xff]
          %v216 = vld [vmem:[%s168 + $0x178] sm:$0xff]
          %v217 = vld [vmem:[%s168 + $0x180] sm:$0xff]
          %v218 = vld [vmem:[%s168 + $0x188] sm:$0xff]
          %v219 = vld [vmem:[%s168 + $0x190] sm:$0xff]
          %v220 = vld [vmem:[%s168 + $0x198] sm:$0xff]
          %v221 = vld [vmem:[%s168 + $0x1a0] sm:$0xff]
          %v222 = vld [vmem:[%s168 + $0x1a8] sm:$0xff]
          %v223 = vld [vmem:[%s168 + $0x1b0] sm:$0xff]
          %v224 = vld [vmem:[%s168 + $0x1b8] sm:$0xff]
          %v225 = vld [vmem:[%s168 + $0x1c0] sm:$0xff]
          %v226 = vld [vmem:[%s168 + $0x1c8] sm:$0xff]
          %v227 = vld [vmem:[%s168 + $0x1d0] sm:$0xff]
          %v228 = vld [vmem:[%s168 + $0x1d8] sm:$0xff]
          %v229 = vld [vmem:[%s168 + $0x1e0] sm:$0xff]
          %v230 = vld [vmem:[%s168 + $0x1e8] sm:$0xff]
          %v231 = vld [vmem:[%s168 + $0x1f0] sm:$0xff]
          %v232 = vld [vmem:[%s168 + $0x1f8] sm:$0xff]
          %v233 = vlaneseq
          %v234 = vand.u32 %v233, 127
          %235 = vset.pattern.permute.xlu0 0
          %236 = vperm.xlu0 %235, %v169
          %v237 = vpop.permute.xlu0 %236
          %238 = vset.pattern.permute.xlu0 0
          %239 = vperm.xlu0 %238, %v170
          %v240 = vpop.permute.xlu0 %239
          %241 = vset.pattern.permute.xlu0 0
          %242 = vperm.xlu0 %241, %v171
          %v243 = vpop.permute.xlu0 %242
          %244 = vset.pattern.permute.xlu0 0
          %245 = vperm.xlu0 %244, %v172
          %v246 = vpop.permute.xlu0 %245
          %247 = vset.pattern.permute.xlu0 0
          %248 = vperm.xlu0 %247, %v173
          %v249 = vpop.permute.xlu0 %248
          %250 = vset.pattern.permute.xlu0 0
          %251 = vperm.xlu0 %250, %v174
          %v252 = vpop.permute.xlu0 %251
          %253 = vset.pattern.permute.xlu0 0
          %254 = vperm.xlu0 %253, %v175
          %v255 = vpop.permute.xlu0 %254
          %256 = vset.pattern.permute.xlu0 0
          %257 = vperm.xlu0 %256, %v176
          %v258 = vpop.permute.xlu0 %257
          %259 = vset.pattern.permute.xlu0 0
          %260 = vperm.xlu0 %259, %v177
          %v261 = vpop.permute.xlu0 %260
          %262 = vset.pattern.permute.xlu0 0
          %263 = vperm.xlu0 %262, %v178
          %v264 = vpop.permute.xlu0 %263
          %265 = vset.pattern.permute.xlu0 0
          %266 = vperm.xlu0 %265, %v179
          %v267 = vpop.permute.xlu0 %266
          %268 = vset.pattern.permute.xlu0 0
          %269 = vperm.xlu0 %268, %v180
          %v270 = vpop.permute.xlu0 %269
          %271 = vset.pattern.permute.xlu0 0
          %272 = vperm.xlu0 %271, %v181
          %v273 = vpop.permute.xlu0 %272
          %274 = vset.pattern.permute.xlu0 0
          %275 = vperm.xlu0 %274, %v182
          %v276 = vpop.permute.xlu0 %275
          %277 = vset.pattern.permute.xlu0 0
          %278 = vperm.xlu0 %277, %v183
          %v279 = vpop.permute.xlu0 %278
          %280 = vset.pattern.permute.xlu0 0
          %281 = vperm.xlu0 %280, %v184
          %v282 = vpop.permute.xlu0 %281
          %283 = vset.pattern.permute.xlu0 0
          %284 = vperm.xlu0 %283, %v185
          %v285 = vpop.permute.xlu0 %284
          %286 = vset.pattern.permute.xlu0 0
          %287 = vperm.xlu0 %286, %v186
          %v288 = vpop.permute.xlu0 %287
          %289 = vset.pattern.permute.xlu0 0
          %290 = vperm.xlu0 %289, %v187
          %v291 = vpop.permute.xlu0 %290
          %292 = vset.pattern.permute.xlu0 0
          %293 = vperm.xlu0 %292, %v188
          %v294 = vpop.permute.xlu0 %293
          %295 = vset.pattern.permute.xlu0 0
          %296 = vperm.xlu0 %295, %v189
          %v297 = vpop.permute.xlu0 %296
          %298 = vset.pattern.permute.xlu0 0
          %299 = vperm.xlu0 %298, %v190
          %v300 = vpop.permute.xlu0 %299
          %301 = vset.pattern.permute.xlu0 0
          %302 = vperm.xlu0 %301, %v191
          %v303 = vpop.permute.xlu0 %302
          %304 = vset.pattern.permute.xlu0 0
          %305 = vperm.xlu0 %304, %v192
          %v306 = vpop.permute.xlu0 %305
          %307 = vset.pattern.permute.xlu0 0
          %308 = vperm.xlu0 %307, %v193
          %v309 = vpop.permute.xlu0 %308
          %310 = vset.pattern.permute.xlu0 0
          %311 = vperm.xlu0 %310, %v194
          %v312 = vpop.permute.xlu0 %311
          %313 = vset.pattern.permute.xlu0 0
          %314 = vperm.xlu0 %313, %v195
          %v315 = vpop.permute.xlu0 %314
          %316 = vset.pattern.permute.xlu0 0
          %317 = vperm.xlu0 %316, %v196
          %v318 = vpop.permute.xlu0 %317
          %319 = vset.pattern.permute.xlu0 0
          %320 = vperm.xlu0 %319, %v197
          %v321 = vpop.permute.xlu0 %320
          %322 = vset.pattern.permute.xlu0 0
          %323 = vperm.xlu0 %322, %v198
          %v324 = vpop.permute.xlu0 %323
          %325 = vset.pattern.permute.xlu0 0
          %326 = vperm.xlu0 %325, %v199
          %v327 = vpop.permute.xlu0 %326
          %328 = vset.pattern.permute.xlu0 0
          %329 = vperm.xlu0 %328, %v200
          %v330 = vpop.permute.xlu0 %329
          %331 = vset.pattern.permute.xlu0 0
          %332 = vperm.xlu0 %331, %v201
          %v333 = vpop.permute.xlu0 %332
          %334 = vset.pattern.permute.xlu0 0
          %335 = vperm.xlu0 %334, %v202
          %v336 = vpop.permute.xlu0 %335
          %337 = vset.pattern.permute.xlu0 0
          %338 = vperm.xlu0 %337, %v203
          %v339 = vpop.permute.xlu0 %338
          %340 = vset.pattern.permute.xlu0 0
          %341 = vperm.xlu0 %340, %v204
          %v342 = vpop.permute.xlu0 %341
          %343 = vset.pattern.permute.xlu0 0
          %344 = vperm.xlu0 %343, %v205
          %v345 = vpop.permute.xlu0 %344
          %346 = vset.pattern.permute.xlu0 0
          %347 = vperm.xlu0 %346, %v206
          %v348 = vpop.permute.xlu0 %347
          %349 = vset.pattern.permute.xlu0 0
          %350 = vperm.xlu0 %349, %v207
          %v351 = vpop.permute.xlu0 %350
          %352 = vset.pattern.permute.xlu0 0
          %353 = vperm.xlu0 %352, %v208
          %v354 = vpop.permute.xlu0 %353
          %355 = vset.pattern.permute.xlu0 0
          %356 = vperm.xlu0 %355, %v209
          %v357 = vpop.permute.xlu0 %356
          %358 = vset.pattern.permute.xlu0 0
          %359 = vperm.xlu0 %358, %v210
          %v360 = vpop.permute.xlu0 %359
          %361 = vset.pattern.permute.xlu0 0
          %362 = vperm.xlu0 %361, %v211
          %v363 = vpop.permute.xlu0 %362
          %364 = vset.pattern.permute.xlu0 0
          %365 = vperm.xlu0 %364, %v212
          %v366 = vpop.permute.xlu0 %365
          %367 = vset.pattern.permute.xlu0 0
          %368 = vperm.xlu0 %367, %v213
          %v369 = vpop.permute.xlu0 %368
          %370 = vset.pattern.permute.xlu0 0
          %371 = vperm.xlu0 %370, %v214
          %v372 = vpop.permute.xlu0 %371
          %373 = vset.pattern.permute.xlu0 0
          %374 = vperm.xlu0 %373, %v215
          %v375 = vpop.permute.xlu0 %374
          %376 = vset.pattern.permute.xlu0 0
          %377 = vperm.xlu0 %376, %v216
          %v378 = vpop.permute.xlu0 %377
          %379 = vset.pattern.permute.xlu0 0
          %380 = vperm.xlu0 %379, %v217
          %v381 = vpop.permute.xlu0 %380
          %382 = vset.pattern.permute.xlu0 0
          %383 = vperm.xlu0 %382, %v218
          %v384 = vpop.permute.xlu0 %383
          %385 = vset.pattern.permute.xlu0 0
          %386 = vperm.xlu0 %385, %v219
          %v387 = vpop.permute.xlu0 %386
          %388 = vset.pattern.permute.xlu0 0
          %389 = vperm.xlu0 %388, %v220
          %v390 = vpop.permute.xlu0 %389
          %391 = vset.pattern.permute.xlu0 0
          %392 = vperm.xlu0 %391, %v221
          %v393 = vpop.permute.xlu0 %392
          %394 = vset.pattern.permute.xlu0 0
          %395 = vperm.xlu0 %394, %v222
          %v396 = vpop.permute.xlu0 %395
          %397 = vset.pattern.permute.xlu0 0
          %398 = vperm.xlu0 %397, %v223
          %v399 = vpop.permute.xlu0 %398
          %400 = vset.pattern.permute.xlu0 0
          %401 = vperm.xlu0 %400, %v224
          %v402 = vpop.permute.xlu0 %401
          %403 = vset.pattern.permute.xlu0 0
          %404 = vperm.xlu0 %403, %v225
          %v405 = vpop.permute.xlu0 %404
          %406 = vset.pattern.permute.xlu0 0
          %407 = vperm.xlu0 %406, %v226
          %v408 = vpop.permute.xlu0 %407
          %409 = vset.pattern.permute.xlu0 0
          %410 = vperm.xlu0 %409, %v227
          %v411 = vpop.permute.xlu0 %410
          %412 = vset.pattern.permute.xlu0 0
          %413 = vperm.xlu0 %412, %v228
          %v414 = vpop.permute.xlu0 %413
          %415 = vset.pattern.permute.xlu0 0
          %416 = vperm.xlu0 %415, %v229
          %v417 = vpop.permute.xlu0 %416
          %418 = vset.pattern.permute.xlu0 0
          %419 = vperm.xlu0 %418, %v230
          %v420 = vpop.permute.xlu0 %419
          %421 = vset.pattern.permute.xlu0 0
          %422 = vperm.xlu0 %421, %v231
          %v423 = vpop.permute.xlu0 %422
          %424 = vset.pattern.permute.xlu0 0
          %425 = vperm.xlu0 %424, %v232
          %v426 = vpop.permute.xlu0 %425
          %vm427 = vcmp.eq.s32.totalorder %v234, %v237
          %vm428 = vcmp.eq.s32.totalorder %v234, %v240
          %vm429 = vcmp.eq.s32.totalorder %v234, %v243
          %vm430 = vcmp.eq.s32.totalorder %v234, %v246
          %vm431 = vcmp.eq.s32.totalorder %v234, %v249
          %vm432 = vcmp.eq.s32.totalorder %v234, %v252
          %vm433 = vcmp.eq.s32.totalorder %v234, %v255
          %vm434 = vcmp.eq.s32.totalorder %v234, %v258
          %vm435 = vcmp.eq.s32.totalorder %v234, %v261
          %vm436 = vcmp.eq.s32.totalorder %v234, %v264
          %vm437 = vcmp.eq.s32.totalorder %v234, %v267
          %vm438 = vcmp.eq.s32.totalorder %v234, %v270
          %vm439 = vcmp.eq.s32.totalorder %v234, %v273
          %vm440 = vcmp.eq.s32.totalorder %v234, %v276
          %vm441 = vcmp.eq.s32.totalorder %v234, %v279
          %vm442 = vcmp.eq.s32.totalorder %v234, %v282
          %vm443 = vcmp.eq.s32.totalorder %v234, %v285
          %vm444 = vcmp.eq.s32.totalorder %v234, %v288
          %vm445 = vcmp.eq.s32.totalorder %v234, %v291
          %vm446 = vcmp.eq.s32.totalorder %v234, %v294
          %vm447 = vcmp.eq.s32.totalorder %v234, %v297
          %vm448 = vcmp.eq.s32.totalorder %v234, %v300
          %vm449 = vcmp.eq.s32.totalorder %v234, %v303
          %vm450 = vcmp.eq.s32.totalorder %v234, %v306
          %vm451 = vcmp.eq.s32.totalorder %v234, %v309
          %vm452 = vcmp.eq.s32.totalorder %v234, %v312
          %vm453 = vcmp.eq.s32.totalorder %v234, %v315
          %vm454 = vcmp.eq.s32.totalorder %v234, %v318
          %vm455 = vcmp.eq.s32.totalorder %v234, %v321
          %vm456 = vcmp.eq.s32.totalorder %v234, %v324
          %vm457 = vcmp.eq.s32.totalorder %v234, %v327
          %vm458 = vcmp.eq.s32.totalorder %v234, %v330
          %vm459 = vcmp.eq.s32.totalorder %v234, %v333
          %vm460 = vcmp.eq.s32.totalorder %v234, %v336
          %vm461 = vcmp.eq.s32.totalorder %v234, %v339
          %vm462 = vcmp.eq.s32.totalorder %v234, %v342
          %vm463 = vcmp.eq.s32.totalorder %v234, %v345
          %vm464 = vcmp.eq.s32.totalorder %v234, %v348
          %vm465 = vcmp.eq.s32.totalorder %v234, %v351
          %vm466 = vcmp.eq.s32.totalorder %v234, %v354
          %vm467 = vcmp.eq.s32.totalorder %v234, %v357
          %vm468 = vcmp.eq.s32.totalorder %v234, %v360
          %vm469 = vcmp.eq.s32.totalorder %v234, %v363
          %vm470 = vcmp.eq.s32.totalorder %v234, %v366
          %vm471 = vcmp.eq.s32.totalorder %v234, %v369
          %vm472 = vcmp.eq.s32.totalorder %v234, %v372
          %vm473 = vcmp.eq.s32.totalorder %v234, %v375
          %vm474 = vcmp.eq.s32.totalorder %v234, %v378
          %vm475 = vcmp.eq.s32.totalorder %v234, %v381
          %vm476 = vcmp.eq.s32.totalorder %v234, %v384
          %vm477 = vcmp.eq.s32.totalorder %v234, %v387
          %vm478 = vcmp.eq.s32.totalorder %v234, %v390
          %vm479 = vcmp.eq.s32.totalorder %v234, %v393
          %vm480 = vcmp.eq.s32.totalorder %v234, %v396
          %vm481 = vcmp.eq.s32.totalorder %v234, %v399
          %vm482 = vcmp.eq.s32.totalorder %v234, %v402
          %vm483 = vcmp.eq.s32.totalorder %v234, %v405
          %vm484 = vcmp.eq.s32.totalorder %v234, %v408
          %vm485 = vcmp.eq.s32.totalorder %v234, %v411
          %vm486 = vcmp.eq.s32.totalorder %v234, %v414
          %vm487 = vcmp.eq.s32.totalorder %v234, %v417
          %vm488 = vcmp.eq.s32.totalorder %v234, %v420
          %vm489 = vcmp.eq.s32.totalorder %v234, %v423
          %vm490 = vcmp.eq.s32.totalorder %v234, %v426
          %v491 = vsel %vm427, 1, 0
          %v492 = vsel %vm428, 1, 0
          %v493 = vsel %vm429, 1, 0
          %v494 = vsel %vm430, 1, 0
          %v495 = vsel %vm431, 1, 0
          %v496 = vsel %vm432, 1, 0
          %v497 = vsel %vm433, 1, 0
          %v498 = vsel %vm434, 1, 0
          %v499 = vsel %vm435, 1, 0
          %v500 = vsel %vm436, 1, 0
          %v501 = vsel %vm437, 1, 0
          %v502 = vsel %vm438, 1, 0
          %v503 = vsel %vm439, 1, 0
          %v504 = vsel %vm440, 1, 0
          %v505 = vsel %vm441, 1, 0
          %v506 = vsel %vm442, 1, 0
          %v507 = vsel %vm443, 1, 0
          %v508 = vsel %vm444, 1, 0
          %v509 = vsel %vm445, 1, 0
          %v510 = vsel %vm446, 1, 0
          %v511 = vsel %vm447, 1, 0
          %v512 = vsel %vm448, 1, 0
          %v513 = vsel %vm449, 1, 0
          %v514 = vsel %vm450, 1, 0
          %v515 = vsel %vm451, 1, 0
          %v516 = vsel %vm452, 1, 0
          %v517 = vsel %vm453, 1, 0
          %v518 = vsel %vm454, 1, 0
          %v519 = vsel %vm455, 1, 0
          %v520 = vsel %vm456, 1, 0
          %v521 = vsel %vm457, 1, 0
          %v522 = vsel %vm458, 1, 0
          %v523 = vsel %vm459, 1, 0
          %v524 = vsel %vm460, 1, 0
          %v525 = vsel %vm461, 1, 0
          %v526 = vsel %vm462, 1, 0
          %v527 = vsel %vm463, 1, 0
          %v528 = vsel %vm464, 1, 0
          %v529 = vsel %vm465, 1, 0
          %v530 = vsel %vm466, 1, 0
          %v531 = vsel %vm467, 1, 0
          %v532 = vsel %vm468, 1, 0
          %v533 = vsel %vm469, 1, 0
          %v534 = vsel %vm470, 1, 0
          %v535 = vsel %vm471, 1, 0
          %v536 = vsel %vm472, 1, 0
          %v537 = vsel %vm473, 1, 0
          %v538 = vsel %vm474, 1, 0
          %v539 = vsel %vm475, 1, 0
          %v540 = vsel %vm476, 1, 0
          %v541 = vsel %vm477, 1, 0
          %v542 = vsel %vm478, 1, 0
          %v543 = vsel %vm479, 1, 0
          %v544 = vsel %vm480, 1, 0
          %v545 = vsel %vm481, 1, 0
          %v546 = vsel %vm482, 1, 0
          %v547 = vsel %vm483, 1, 0
          %v548 = vsel %vm484, 1, 0
          %v549 = vsel %vm485, 1, 0
          %v550 = vsel %vm486, 1, 0
          %v551 = vsel %vm487, 1, 0
          %v552 = vsel %vm488, 1, 0
          %v553 = vsel %vm489, 1, 0
          %v554 = vsel %vm490, 1, 0
          %v555 = vcvt.s32.f32 %v491
          %v556 = vcvt.s32.f32 %v492
          %v557 = vcvt.s32.f32 %v493
          %v558 = vcvt.s32.f32 %v494
          %v559 = vcvt.s32.f32 %v495
          %v560 = vcvt.s32.f32 %v496
          %v561 = vcvt.s32.f32 %v497
          %v562 = vcvt.s32.f32 %v498
          %v563 = vcvt.s32.f32 %v499
          %v564 = vcvt.s32.f32 %v500
          %v565 = vcvt.s32.f32 %v501
          %v566 = vcvt.s32.f32 %v502
          %v567 = vcvt.s32.f32 %v503
          %v568 = vcvt.s32.f32 %v504
          %v569 = vcvt.s32.f32 %v505
          %v570 = vcvt.s32.f32 %v506
          %v571 = vcvt.s32.f32 %v507
          %v572 = vcvt.s32.f32 %v508
          %v573 = vcvt.s32.f32 %v509
          %v574 = vcvt.s32.f32 %v510
          %v575 = vcvt.s32.f32 %v511
          %v576 = vcvt.s32.f32 %v512
          %v577 = vcvt.s32.f32 %v513
          %v578 = vcvt.s32.f32 %v514
          %v579 = vcvt.s32.f32 %v515
          %v580 = vcvt.s32.f32 %v516
          %v581 = vcvt.s32.f32 %v517
          %v582 = vcvt.s32.f32 %v518
          %v583 = vcvt.s32.f32 %v519
          %v584 = vcvt.s32.f32 %v520
          %v585 = vcvt.s32.f32 %v521
          %v586 = vcvt.s32.f32 %v522
          %v587 = vcvt.s32.f32 %v523
          %v588 = vcvt.s32.f32 %v524
          %v589 = vcvt.s32.f32 %v525
          %v590 = vcvt.s32.f32 %v526
          %v591 = vcvt.s32.f32 %v527
          %v592 = vcvt.s32.f32 %v528
          %v593 = vcvt.s32.f32 %v529
          %v594 = vcvt.s32.f32 %v530
          %v595 = vcvt.s32.f32 %v531
          %v596 = vcvt.s32.f32 %v532
          %v597 = vcvt.s32.f32 %v533
          %v598 = vcvt.s32.f32 %v534
          %v599 = vcvt.s32.f32 %v535
          %v600 = vcvt.s32.f32 %v536
          %v601 = vcvt.s32.f32 %v537
          %v602 = vcvt.s32.f32 %v538
          %v603 = vcvt.s32.f32 %v539
          %v604 = vcvt.s32.f32 %v540
          %v605 = vcvt.s32.f32 %v541
          %v606 = vcvt.s32.f32 %v542
          %v607 = vcvt.s32.f32 %v543
          %v608 = vcvt.s32.f32 %v544
          %v609 = vcvt.s32.f32 %v545
          %v610 = vcvt.s32.f32 %v546
          %v611 = vcvt.s32.f32 %v547
          %v612 = vcvt.s32.f32 %v548
          %v613 = vcvt.s32.f32 %v549
          %v614 = vcvt.s32.f32 %v550
          %v615 = vcvt.s32.f32 %v551
          %v616 = vcvt.s32.f32 %v552
          %v617 = vcvt.s32.f32 %v553
          %v618 = vcvt.s32.f32 %v554
          %619 = vmatpush.msra.mxu0 %v160
          %620 = vmatpush.msra.mxu0 %v159
          %621 = vmatpush.msra.mxu0 %v158
          %622 = vmatpush.msra.mxu0 %v157
          %623 = vmatpush.msra.mxu0 %v156
          %624 = vmatpush.msra.mxu0 %v155
          %625 = vmatpush.msra.mxu0 %v154
          %626 = vmatpush.msra.mxu0 %v153
          %627 = vmatpush.msra.mxu0 %v152
          %628 = vmatpush.msra.mxu0 %v151
          %629 = vmatpush.msra.mxu0 %v150
          %630 = vmatpush.msra.mxu0 %v149
          %631 = vmatpush.msra.mxu0 %v148
          %632 = vmatpush.msra.mxu0 %v147
          %633 = vmatpush.msra.mxu0 %v146
          %634 = vmatpush.msra.mxu0 %v145
          %635 = vmatmul.f32.gmra.mxu0 %v555
          %v636 = vpop.f32.mrf.mxu0
          %v637 = vadd.f32 0.0, %v636
          %638 = vmatmul.f32.gmra.mxu0 %v556
          %v639 = vpop.f32.mrf.mxu0
          %v640 = vadd.f32 0.0, %v639
          %641 = vmatmul.f32.gmra.mxu0 %v557
          %v642 = vpop.f32.mrf.mxu0
          %v643 = vadd.f32 0.0, %v642
          %644 = vmatmul.f32.gmra.mxu0 %v558
          %v645 = vpop.f32.mrf.mxu0
          %v646 = vadd.f32 0.0, %v645
          %647 = vmatmul.f32.gmra.mxu0 %v559
          %v648 = vpop.f32.mrf.mxu0
          %v649 = vadd.f32 0.0, %v648
          %650 = vmatmul.f32.gmra.mxu0 %v560
          %v651 = vpop.f32.mrf.mxu0
          %v652 = vadd.f32 0.0, %v651
          %653 = vmatmul.f32.gmra.mxu0 %v561
          %v654 = vpop.f32.mrf.mxu0
          %v655 = vadd.f32 0.0, %v654
          %656 = vmatmul.f32.gmra.mxu0 %v562
          %v657 = vpop.f32.mrf.mxu0
          %v658 = vadd.f32 0.0, %v657
          %659 = vmatmul.f32.gmra.mxu0 %v563
          %v660 = vpop.f32.mrf.mxu0
          %v661 = vadd.f32 0.0, %v660
          %662 = vmatmul.f32.gmra.mxu0 %v564
          %v663 = vpop.f32.mrf.mxu0
          %v664 = vadd.f32 0.0, %v663
          %665 = vmatmul.f32.gmra.mxu0 %v565
          %v666 = vpop.f32.mrf.mxu0
          %v667 = vadd.f32 0.0, %v666
          %668 = vmatmul.f32.gmra.mxu0 %v566
          %v669 = vpop.f32.mrf.mxu0
          %v670 = vadd.f32 0.0, %v669
          %671 = vmatmul.f32.gmra.mxu0 %v567
          %v672 = vpop.f32.mrf.mxu0
          %v673 = vadd.f32 0.0, %v672
          %674 = vmatmul.f32.gmra.mxu0 %v568
          %v675 = vpop.f32.mrf.mxu0
          %v676 = vadd.f32 0.0, %v675
          %677 = vmatmul.f32.gmra.mxu0 %v569
          %v678 = vpop.f32.mrf.mxu0
          %v679 = vadd.f32 0.0, %v678
          %680 = vmatmul.f32.gmra.mxu0 %v570
          %v681 = vpop.f32.mrf.mxu0
          %v682 = vadd.f32 0.0, %v681
          %683 = vmatmul.f32.gmra.mxu0 %v571
          %v684 = vpop.f32.mrf.mxu0
          %v685 = vadd.f32 0.0, %v684
          %686 = vmatmul.f32.gmra.mxu0 %v572
          %v687 = vpop.f32.mrf.mxu0
          %v688 = vadd.f32 0.0, %v687
          %689 = vmatmul.f32.gmra.mxu0 %v573
          %v690 = vpop.f32.mrf.mxu0
          %v691 = vadd.f32 0.0, %v690
          %692 = vmatmul.f32.gmra.mxu0 %v574
          %v693 = vpop.f32.mrf.mxu0
          %v694 = vadd.f32 0.0, %v693
          %695 = vmatmul.f32.gmra.mxu0 %v575
          %v696 = vpop.f32.mrf.mxu0
          %v697 = vadd.f32 0.0, %v696
          %698 = vmatmul.f32.gmra.mxu0 %v576
          %v699 = vpop.f32.mrf.mxu0
          %v700 = vadd.f32 0.0, %v699
          %701 = vmatmul.f32.gmra.mxu0 %v577
          %v702 = vpop.f32.mrf.mxu0
          %v703 = vadd.f32 0.0, %v702
          %704 = vmatmul.f32.gmra.mxu0 %v578
          %v705 = vpop.f32.mrf.mxu0
          %v706 = vadd.f32 0.0, %v705
          %707 = vmatmul.f32.gmra.mxu0 %v579
          %v708 = vpop.f32.mrf.mxu0
          %v709 = vadd.f32 0.0, %v708
          %710 = vmatmul.f32.gmra.mxu0 %v580
          %v711 = vpop.f32.mrf.mxu0
          %v712 = vadd.f32 0.0, %v711
          %713 = vmatmul.f32.gmra.mxu0 %v581
          %v714 = vpop.f32.mrf.mxu0
          %v715 = vadd.f32 0.0, %v714
          %716 = vmatmul.f32.gmra.mxu0 %v582
          %v717 = vpop.f32.mrf.mxu0
          %v718 = vadd.f32 0.0, %v717
          %719 = vmatmul.f32.gmra.mxu0 %v583
          %v720 = vpop.f32.mrf.mxu0
          %v721 = vadd.f32 0.0, %v720
          %722 = vmatmul.f32.gmra.mxu0 %v584
          %v723 = vpop.f32.mrf.mxu0
          %v724 = vadd.f32 0.0, %v723
          %725 = vmatmul.f32.gmra.mxu0 %v585
          %v726 = vpop.f32.mrf.mxu0
          %v727 = vadd.f32 0.0, %v726
          %728 = vmatmul.f32.gmra.mxu0 %v586
          %v729 = vpop.f32.mrf.mxu0
          %v730 = vadd.f32 0.0, %v729
          %731 = vmatmul.f32.gmra.mxu0 %v587
          %v732 = vpop.f32.mrf.mxu0
          %v733 = vadd.f32 0.0, %v732
          %734 = vmatmul.f32.gmra.mxu0 %v588
          %v735 = vpop.f32.mrf.mxu0
          %v736 = vadd.f32 0.0, %v735
          %737 = vmatmul.f32.gmra.mxu0 %v589
          %v738 = vpop.f32.mrf.mxu0
          %v739 = vadd.f32 0.0, %v738
          %740 = vmatmul.f32.gmra.mxu0 %v590
          %v741 = vpop.f32.mrf.mxu0
          %v742 = vadd.f32 0.0, %v741
          %743 = vmatmul.f32.gmra.mxu0 %v591
          %v744 = vpop.f32.mrf.mxu0
          %v745 = vadd.f32 0.0, %v744
          %746 = vmatmul.f32.gmra.mxu0 %v592
          %v747 = vpop.f32.mrf.mxu0
          %v748 = vadd.f32 0.0, %v747
          %749 = vmatmul.f32.gmra.mxu0 %v593
          %v750 = vpop.f32.mrf.mxu0
          %v751 = vadd.f32 0.0, %v750
          %752 = vmatmul.f32.gmra.mxu0 %v594
          %v753 = vpop.f32.mrf.mxu0
          %v754 = vadd.f32 0.0, %v753
          %755 = vmatmul.f32.gmra.mxu0 %v595
          %v756 = vpop.f32.mrf.mxu0
          %v757 = vadd.f32 0.0, %v756
          %758 = vmatmul.f32.gmra.mxu0 %v596
          %v759 = vpop.f32.mrf.mxu0
          %v760 = vadd.f32 0.0, %v759
          %761 = vmatmul.f32.gmra.mxu0 %v597
          %v762 = vpop.f32.mrf.mxu0
          %v763 = vadd.f32 0.0, %v762
          %764 = vmatmul.f32.gmra.mxu0 %v598
          %v765 = vpop.f32.mrf.mxu0
          %v766 = vadd.f32 0.0, %v765
          %767 = vmatmul.f32.gmra.mxu0 %v599
          %v768 = vpop.f32.mrf.mxu0
          %v769 = vadd.f32 0.0, %v768
          %770 = vmatmul.f32.gmra.mxu0 %v600
          %v771 = vpop.f32.mrf.mxu0
          %v772 = vadd.f32 0.0, %v771
          %773 = vmatmul.f32.gmra.mxu0 %v601
          %v774 = vpop.f32.mrf.mxu0
          %v775 = vadd.f32 0.0, %v774
          %776 = vmatmul.f32.gmra.mxu0 %v602
          %v777 = vpop.f32.mrf.mxu0
          %v778 = vadd.f32 0.0, %v777
          %779 = vmatmul.f32.gmra.mxu0 %v603
          %v780 = vpop.f32.mrf.mxu0
          %v781 = vadd.f32 0.0, %v780
          %782 = vmatmul.f32.gmra.mxu0 %v604
          %v783 = vpop.f32.mrf.mxu0
          %v784 = vadd.f32 0.0, %v783
          %785 = vmatmul.f32.gmra.mxu0 %v605
          %v786 = vpop.f32.mrf.mxu0
          %v787 = vadd.f32 0.0, %v786
          %788 = vmatmul.f32.gmra.mxu0 %v606
          %v789 = vpop.f32.mrf.mxu0
          %v790 = vadd.f32 0.0, %v789
          %791 = vmatmul.f32.gmra.mxu0 %v607
          %v792 = vpop.f32.mrf.mxu0
          %v793 = vadd.f32 0.0, %v792
          %794 = vmatmul.f32.gmra.mxu0 %v608
          %v795 = vpop.f32.mrf.mxu0
          %v796 = vadd.f32 0.0, %v795
          %797 = vmatmul.f32.gmra.mxu0 %v609
          %v798 = vpop.f32.mrf.mxu0
          %v799 = vadd.f32 0.0, %v798
          %800 = vmatmul.f32.gmra.mxu0 %v610
          %v801 = vpop.f32.mrf.mxu0
          %v802 = vadd.f32 0.0, %v801
          %803 = vmatmul.f32.gmra.mxu0 %v611
          %v804 = vpop.f32.mrf.mxu0
          %v805 = vadd.f32 0.0, %v804
          %806 = vmatmul.f32.gmra.mxu0 %v612
          %v807 = vpop.f32.mrf.mxu0
          %v808 = vadd.f32 0.0, %v807
          %809 = vmatmul.f32.gmra.mxu0 %v613
          %v810 = vpop.f32.mrf.mxu0
          %v811 = vadd.f32 0.0, %v810
          %812 = vmatmul.f32.gmra.mxu0 %v614
          %v813 = vpop.f32.mrf.mxu0
          %v814 = vadd.f32 0.0, %v813
          %815 = vmatmul.f32.gmra.mxu0 %v615
          %v816 = vpop.f32.mrf.mxu0
          %v817 = vadd.f32 0.0, %v816
          %818 = vmatmul.f32.gmra.mxu0 %v616
          %v819 = vpop.f32.mrf.mxu0
          %v820 = vadd.f32 0.0, %v819
          %821 = vmatmul.f32.gmra.mxu0 %v617
          %v822 = vpop.f32.mrf.mxu0
          %v823 = vadd.f32 0.0, %v822
          %824 = vmatmul.f32.gmra.mxu0 %v618
          %v825 = vpop.f32.mrf.mxu0
          %v826 = vadd.f32 0.0, %v825
          %827 = vdwg.mxu0
          %s828 = scalar_lea.vmem %s133, %s167 [#allocation2]
          %vm829 = vcmask 523264
          %830 = vst.msk [vmem:[%s828] sm:$0xff] %vm829, %v637
          %831 = vst.msk [vmem:[%s828 + $0x8] sm:$0xff] %vm829, %v640
          %832 = vst.msk [vmem:[%s828 + $0x10] sm:$0xff] %vm829, %v643
          %833 = vst.msk [vmem:[%s828 + $0x18] sm:$0xff] %vm829, %v646
          %834 = vst.msk [vmem:[%s828 + $0x20] sm:$0xff] %vm829, %v649
          %835 = vst.msk [vmem:[%s828 + $0x28] sm:$0xff] %vm829, %v652
          %836 = vst.msk [vmem:[%s828 + $0x30] sm:$0xff] %vm829, %v655
          %837 = vst.msk [vmem:[%s828 + $0x38] sm:$0xff] %vm829, %v658
          %838 = vst.msk [vmem:[%s828 + $0x40] sm:$0xff] %vm829, %v661
          %839 = vst.msk [vmem:[%s828 + $0x48] sm:$0xff] %vm829, %v664
          %840 = vst.msk [vmem:[%s828 + $0x50] sm:$0xff] %vm829, %v667
          %841 = vst.msk [vmem:[%s828 + $0x58] sm:$0xff] %vm829, %v670
          %842 = vst.msk [vmem:[%s828 + $0x60] sm:$0xff] %vm829, %v673
          %843 = vst.msk [vmem:[%s828 + $0x68] sm:$0xff] %vm829, %v676
          %844 = vst.msk [vmem:[%s828 + $0x70] sm:$0xff] %vm829, %v679
          %845 = vst.msk [vmem:[%s828 + $0x78] sm:$0xff] %vm829, %v682
          %846 = vst.msk [vmem:[%s828 + $0x80] sm:$0xff] %vm829, %v685
          %847 = vst.msk [vmem:[%s828 + $0x88] sm:$0xff] %vm829, %v688
          %848 = vst.msk [vmem:[%s828 + $0x90] sm:$0xff] %vm829, %v691
          %849 = vst.msk [vmem:[%s828 + $0x98] sm:$0xff] %vm829, %v694
          %850 = vst.msk [vmem:[%s828 + $0xa0] sm:$0xff] %vm829, %v697
          %851 = vst.msk [vmem:[%s828 + $0xa8] sm:$0xff] %vm829, %v700
          %852 = vst.msk [vmem:[%s828 + $0xb0] sm:$0xff] %vm829, %v703
          %853 = vst.msk [vmem:[%s828 + $0xb8] sm:$0xff] %vm829, %v706
          %854 = vst.msk [vmem:[%s828 + $0xc0] sm:$0xff] %vm829, %v709
          %855 = vst.msk [vmem:[%s828 + $0xc8] sm:$0xff] %vm829, %v712
          %856 = vst.msk [vmem:[%s828 + $0xd0] sm:$0xff] %vm829, %v715
          %857 = vst.msk [vmem:[%s828 + $0xd8] sm:$0xff] %vm829, %v718
          %858 = vst.msk [vmem:[%s828 + $0xe0] sm:$0xff] %vm829, %v721
          %859 = vst.msk [vmem:[%s828 + $0xe8] sm:$0xff] %vm829, %v724
          %860 = vst.msk [vmem:[%s828 + $0xf0] sm:$0xff] %vm829, %v727
          %861 = vst.msk [vmem:[%s828 + $0xf8] sm:$0xff] %vm829, %v730
          %862 = vst.msk [vmem:[%s828 + $0x100] sm:$0xff] %vm829, %v733
          %863 = vst.msk [vmem:[%s828 + $0x108] sm:$0xff] %vm829, %v736
          %864 = vst.msk [vmem:[%s828 + $0x110] sm:$0xff] %vm829, %v739
          %865 = vst.msk [vmem:[%s828 + $0x118] sm:$0xff] %vm829, %v742
          %866 = vst.msk [vmem:[%s828 + $0x120] sm:$0xff] %vm829, %v745
          %867 = vst.msk [vmem:[%s828 + $0x128] sm:$0xff] %vm829, %v748
          %868 = vst.msk [vmem:[%s828 + $0x130] sm:$0xff] %vm829, %v751
          %869 = vst.msk [vmem:[%s828 + $0x138] sm:$0xff] %vm829, %v754
          %870 = vst.msk [vmem:[%s828 + $0x140] sm:$0xff] %vm829, %v757
          %871 = vst.msk [vmem:[%s828 + $0x148] sm:$0xff] %vm829, %v760
          %872 = vst.msk [vmem:[%s828 + $0x150] sm:$0xff] %vm829, %v763
          %873 = vst.msk [vmem:[%s828 + $0x158] sm:$0xff] %vm829, %v766
          %874 = vst.msk [vmem:[%s828 + $0x160] sm:$0xff] %vm829, %v769
          %875 = vst.msk [vmem:[%s828 + $0x168] sm:$0xff] %vm829, %v772
          %876 = vst.msk [vmem:[%s828 + $0x170] sm:$0xff] %vm829, %v775
          %877 = vst.msk [vmem:[%s828 + $0x178] sm:$0xff] %vm829, %v778
          %878 = vst.msk [vmem:[%s828 + $0x180] sm:$0xff] %vm829, %v781
          %879 = vst.msk [vmem:[%s828 + $0x188] sm:$0xff] %vm829, %v784
          %880 = vst.msk [vmem:[%s828 + $0x190] sm:$0xff] %vm829, %v787
          %881 = vst.msk [vmem:[%s828 + $0x198] sm:$0xff] %vm829, %v790
          %882 = vst.msk [vmem:[%s828 + $0x1a0] sm:$0xff] %vm829, %v793
          %883 = vst.msk [vmem:[%s828 + $0x1a8] sm:$0xff] %vm829, %v796
          %884 = vst.msk [vmem:[%s828 + $0x1b0] sm:$0xff] %vm829, %v799
          %885 = vst.msk [vmem:[%s828 + $0x1b8] sm:$0xff] %vm829, %v802
          %886 = vst.msk [vmem:[%s828 + $0x1c0] sm:$0xff] %vm829, %v805
          %887 = vst.msk [vmem:[%s828 + $0x1c8] sm:$0xff] %vm829, %v808
          %888 = vst.msk [vmem:[%s828 + $0x1d0] sm:$0xff] %vm829, %v811
          %889 = vst.msk [vmem:[%s828 + $0x1d8] sm:$0xff] %vm829, %v814
          %890 = vst.msk [vmem:[%s828 + $0x1e0] sm:$0xff] %vm829, %v817
          %891 = vst.msk [vmem:[%s828 + $0x1e8] sm:$0xff] %vm829, %v820
          %892 = vst.msk [vmem:[%s828 + $0x1f0] sm:$0xff] %vm829, %v823
          %893 = vst.msk [vmem:[%s828 + $0x1f8] sm:$0xff] %vm829, %v826
        $region33: #{tpu_custom_call.1} parent=27 // loop_footer
          %s166 = sadd.s32 1, %s162
        $region34: #{tpu_custom_call.1} parent=27 // loop_footer_branch
          %161 = sbr.rel target = $region30
        $region35: #{tpu_custom_call.1} parent=27 // loop_exit
          _
        %s894 = sand.u32 %s68, 1
        %s895 = sand.u32 %s68, 1
        %s896 = smul.addr %s895, 2560
        %s897 = scalar_lea.vmem [#allocation2], %s896
        // Predicated region
        $region36: #{tpu_custom_call.1} parent=27 // pred_check
          %p898 = pneg %p78
        $region37: #{tpu_custom_call.1} parent=27 // pred_check_branch
          %900 = sbr.rel (%p898) target = $region39
        $region38: #{tpu_custom_call.1} parent=27 // pred_region
          %s901 = smul.u32 320, %s13
          %s902 = ssub.s32 529, %s901
          %p903 = scmp.lt.s32.totalorder %s902, 320
          %s904 = scalar_select %p903, %s902, 320
          %s905 = smul.u32 8, %s904
          %p906 = scmp.ne.s32.totalorder 0, %s905
          %s907 = smul.addr %s901, 8
          %s908 = scalar_lea.vmem %s2, %s907
          // Predicated region
          $region40: #{tpu_custom_call.1} parent=38 // pred_check
            %p909 = pneg %p906
          $region41: #{tpu_custom_call.1} parent=38 // pred_check_branch
            %911 = sbr.rel (%p909) target = $region43
          $region42: #{tpu_custom_call.1} parent=38 // pred_region
            // Predicated region
            $region44: #{tpu_custom_call.1} parent=42 // pred_check
              _
            $region45: #{tpu_custom_call.1} parent=42 // pred_check_branch
              %913 = sbr.rel (0) target = $region47
            $region46: #{tpu_custom_call.1} parent=42 // pred_region
              // Predicated region
              $region66: #{tpu_custom_call.1} parent=46 // pred_check
                _
              $region67: #{tpu_custom_call.1} parent=46 // pred_check_branch
                %1025 = sbr.rel (0) target = $region69
              $region68: #{tpu_custom_call.1} parent=46 // pred_region
                %s1026 = sshrl.u32 %s904, 5
                // While loop
                $region70: #{tpu_custom_call.1} parent=68 // loop_pre_header
                  _
                $region71: #{tpu_custom_call.1} parent=68 // loop_header
                  %s1028 = sphi 0, %s1030
                  %p1029 = scmp.ge.s32.totalorder %s1028, %s1026
                  %s1033 = sphi 0, %s1102
                  %s1034 = sphi %s897, %s1105
                  %s1035 = sphi %s908, %s1106
                $region72: #{tpu_custom_call.1} parent=68 // loop_header_branch
                  %1032 = sbr.rel (%p1029) target = $region76
                $region73: #{tpu_custom_call.1} parent=68 // loop_body
                  %v1036 = vld [vmem:[%s1034] sm:$0xff]
                  %1037 = vst [vmem:[%s1035] sm:$0xff] %v1036
                  %v1038 = vld [vmem:[%s1034 + $0x8] sm:$0xff]
                  %1039 = vst [vmem:[%s1035 + $0x8] sm:$0xff] %v1038
                  %v1040 = vld [vmem:[%s1034 + $0x10] sm:$0xff]
                  %1041 = vst [vmem:[%s1035 + $0x10] sm:$0xff] %v1040
                  %v1042 = vld [vmem:[%s1034 + $0x18] sm:$0xff]
                  %1043 = vst [vmem:[%s1035 + $0x18] sm:$0xff] %v1042
                  %v1044 = vld [vmem:[%s1034 + $0x20] sm:$0xff]
                  %1045 = vst [vmem:[%s1035 + $0x20] sm:$0xff] %v1044
                  %v1046 = vld [vmem:[%s1034 + $0x28] sm:$0xff]
                  %1047 = vst [vmem:[%s1035 + $0x28] sm:$0xff] %v1046
                  %v1048 = vld [vmem:[%s1034 + $0x30] sm:$0xff]
                  %1049 = vst [vmem:[%s1035 + $0x30] sm:$0xff] %v1048
                  %v1050 = vld [vmem:[%s1034 + $0x38] sm:$0xff]
                  %1051 = vst [vmem:[%s1035 + $0x38] sm:$0xff] %v1050
                  %v1052 = vld [vmem:[%s1034 + $0x40] sm:$0xff]
                  %1053 = vst [vmem:[%s1035 + $0x40] sm:$0xff] %v1052
                  %v1054 = vld [vmem:[%s1034 + $0x48] sm:$0xff]
                  %1055 = vst [vmem:[%s1035 + $0x48] sm:$0xff] %v1054
                  %v1056 = vld [vmem:[%s1034 + $0x50] sm:$0xff]
                  %1057 = vst [vmem:[%s1035 + $0x50] sm:$0xff] %v1056
                  %v1058 = vld [vmem:[%s1034 + $0x58] sm:$0xff]
                  %1059 = vst [vmem:[%s1035 + $0x58] sm:$0xff] %v1058
                  %v1060 = vld [vmem:[%s1034 + $0x60] sm:$0xff]
                  %1061 = vst [vmem:[%s1035 + $0x60] sm:$0xff] %v1060
                  %v1062 = vld [vmem:[%s1034 + $0x68] sm:$0xff]
                  %1063 = vst [vmem:[%s1035 + $0x68] sm:$0xff] %v1062
                  %v1064 = vld [vmem:[%s1034 + $0x70] sm:$0xff]
                  %1065 = vst [vmem:[%s1035 + $0x70] sm:$0xff] %v1064
                  %v1066 = vld [vmem:[%s1034 + $0x78] sm:$0xff]
                  %1067 = vst [vmem:[%s1035 + $0x78] sm:$0xff] %v1066
                  %v1068 = vld [vmem:[%s1034 + $0x80] sm:$0xff]
                  %1069 = vst [vmem:[%s1035 + $0x80] sm:$0xff] %v1068
                  %v1070 = vld [vmem:[%s1034 + $0x88] sm:$0xff]
                  %1071 = vst [vmem:[%s1035 + $0x88] sm:$0xff] %v1070
                  %v1072 = vld [vmem:[%s1034 + $0x90] sm:$0xff]
                  %1073 = vst [vmem:[%s1035 + $0x90] sm:$0xff] %v1072
                  %v1074 = vld [vmem:[%s1034 + $0x98] sm:$0xff]
                  %1075 = vst [vmem:[%s1035 + $0x98] sm:$0xff] %v1074
                  %v1076 = vld [vmem:[%s1034 + $0xa0] sm:$0xff]
                  %1077 = vst [vmem:[%s1035 + $0xa0] sm:$0xff] %v1076
                  %v1078 = vld [vmem:[%s1034 + $0xa8] sm:$0xff]
                  %1079 = vst [vmem:[%s1035 + $0xa8] sm:$0xff] %v1078
                  %v1080 = vld [vmem:[%s1034 + $0xb0] sm:$0xff]
                  %1081 = vst [vmem:[%s1035 + $0xb0] sm:$0xff] %v1080
                  %v1082 = vld [vmem:[%s1034 + $0xb8] sm:$0xff]
                  %1083 = vst [vmem:[%s1035 + $0xb8] sm:$0xff] %v1082
                  %v1084 = vld [vmem:[%s1034 + $0xc0] sm:$0xff]
                  %1085 = vst [vmem:[%s1035 + $0xc0] sm:$0xff] %v1084
                  %v1086 = vld [vmem:[%s1034 + $0xc8] sm:$0xff]
                  %1087 = vst [vmem:[%s1035 + $0xc8] sm:$0xff] %v1086
                  %v1088 = vld [vmem:[%s1034 + $0xd0] sm:$0xff]
                  %1089 = vst [vmem:[%s1035 + $0xd0] sm:$0xff] %v1088
                  %v1090 = vld [vmem:[%s1034 + $0xd8] sm:$0xff]
                  %1091 = vst [vmem:[%s1035 + $0xd8] sm:$0xff] %v1090
                  %v1092 = vld [vmem:[%s1034 + $0xe0] sm:$0xff]
                  %1093 = vst [vmem:[%s1035 + $0xe0] sm:$0xff] %v1092
                  %v1094 = vld [vmem:[%s1034 + $0xe8] sm:$0xff]
                  %1095 = vst [vmem:[%s1035 + $0xe8] sm:$0xff] %v1094
                  %v1096 = vld [vmem:[%s1034 + $0xf0] sm:$0xff]
                  %1097 = vst [vmem:[%s1035 + $0xf0] sm:$0xff] %v1096
                  %v1098 = vld [vmem:[%s1034 + $0xf8] sm:$0xff]
                  %1099 = vst [vmem:[%s1035 + $0xf8] sm:$0xff] %v1098
                  %s1100 = sadd.s32 1, %s1033
                  %p1101 = scmp.ge.s32.totalorder %s1100, %s1026
                  %s1102 = scalar_select %p1101, 0, %s1100
                  %s1103 = smul.u32 %s1102, 256
                  %s1104 = smul.u32 %s1102, 256
                  %s1105 = scalar_lea.vmem %s897, %s1103 [#allocation2]
                  %s1106 = scalar_lea.vmem %s908, %s1104
                $region74: #{tpu_custom_call.1} parent=68 // loop_footer
                  %s1030 = sadd.s32 %s1028, 1
                $region75: #{tpu_custom_call.1} parent=68 // loop_footer_branch
                  %1027 = sbr.rel target = $region71
                $region76: #{tpu_custom_call.1} parent=68 // loop_exit
                  _
                %s1107 = sshrl.u32 %s904, 5
                %s1108 = sand.u32 %s904, 31
                %s1109 = smul.u32 %s1107, 32
                %s1110 = smul.u32 8, %s1109
                %s1111 = scalar_lea.vmem %s897, %s1110 [#allocation2]
                %s1112 = smul.u32 8, %s1109
                %s1113 = scalar_lea.vmem %s908, %s1112
                // While loop
                $region77: #{tpu_custom_call.1} parent=68 // loop_pre_header
                  _
                $region78: #{tpu_custom_call.1} parent=68 // loop_header
                  %s1115 = sphi 0, %s1117
                  %p1116 = scmp.ge.s32.totalorder %s1115, %s1108
                  %s1120 = sphi 0, %s1127
                  %s1121 = sphi %s1111, %s1130
                  %s1122 = sphi %s1113, %s1131
                $region79: #{tpu_custom_call.1} parent=68 // loop_header_branch
                  %1119 = sbr.rel (%p1116) target = $region83
                $region80: #{tpu_custom_call.1} parent=68 // loop_body
                  %v1123 = vld [vmem:[%s1121] sm:$0xff]
                  %1124 = vst [vmem:[%s1122] sm:$0xff] %v1123
                  %s1125 = sadd.s32 1, %s1120
                  %p1126 = scmp.ge.s32.totalorder %s1125, %s1108
                  %s1127 = scalar_select %p1126, 0, %s1125
                  %s1128 = smul.u32 %s1127, 8
                  %s1129 = smul.u32 %s1127, 8
                  %s1130 = scalar_lea.vmem %s1111, %s1128 [#allocation2]
                  %s1131 = scalar_lea.vmem %s1113, %s1129
                $region81: #{tpu_custom_call.1} parent=68 // loop_footer
                  %s1117 = sadd.s32 %s1115, 1
                $region82: #{tpu_custom_call.1} parent=68 // loop_footer_branch
                  %1114 = sbr.rel target = $region78
                $region83: #{tpu_custom_call.1} parent=68 // loop_exit
                  _
              $region69: #{tpu_custom_call.1} parent=46 // pred_fallthru
                _
              // Predicated region
              $region84: #{tpu_custom_call.1} parent=46 // pred_check
                _
              $region85: #{tpu_custom_call.1} parent=46 // pred_check_branch
                %1133 = sbr.rel target = $region87
              $region86: #{tpu_custom_call.1} parent=46 // pred_region
                _
              $region87: #{tpu_custom_call.1} parent=46 // pred_fallthru
                _
            $region47: #{tpu_custom_call.1} parent=42 // pred_fallthru
              _
            // Predicated region
            $region48: #{tpu_custom_call.1} parent=42 // pred_check
              _
            $region49: #{tpu_custom_call.1} parent=42 // pred_check_branch
              %915 = sbr.rel target = $region51
            $region50: #{tpu_custom_call.1} parent=42 // pred_region
              %s917 = ssub.s32 256, 1
              %s918 = sshrl.u32 %s904, 5
              // While loop
              $region52: #{tpu_custom_call.1} parent=50 // loop_pre_header
                _
              $region53: #{tpu_custom_call.1} parent=50 // loop_header
                %s920 = sphi 0, %s922
                %p921 = scmp.ge.s32.totalorder %s920, %s918
                %s925 = sphi 0, %s994
                %s926 = sphi %s897, %s997
                %s927 = sphi %s908, %s998
              $region54: #{tpu_custom_call.1} parent=50 // loop_header_branch
                %924 = sbr.rel (%p921) target = $region58
              $region55: #{tpu_custom_call.1} parent=50 // loop_body
                %v928 = vld [vmem:[%s926] sm:%s917]
                %929 = vst [vmem:[%s927] sm:%s917] %v928
                %v930 = vld [vmem:[%s926 + $0x8] sm:%s917]
                %931 = vst [vmem:[%s927 + $0x8] sm:%s917] %v930
                %v932 = vld [vmem:[%s926 + $0x10] sm:%s917]
                %933 = vst [vmem:[%s927 + $0x10] sm:%s917] %v932
                %v934 = vld [vmem:[%s926 + $0x18] sm:%s917]
                %935 = vst [vmem:[%s927 + $0x18] sm:%s917] %v934
                %v936 = vld [vmem:[%s926 + $0x20] sm:%s917]
                %937 = vst [vmem:[%s927 + $0x20] sm:%s917] %v936
                %v938 = vld [vmem:[%s926 + $0x28] sm:%s917]
                %939 = vst [vmem:[%s927 + $0x28] sm:%s917] %v938
                %v940 = vld [vmem:[%s926 + $0x30] sm:%s917]
                %941 = vst [vmem:[%s927 + $0x30] sm:%s917] %v940
                %v942 = vld [vmem:[%s926 + $0x38] sm:%s917]
                %943 = vst [vmem:[%s927 + $0x38] sm:%s917] %v942
                %v944 = vld [vmem:[%s926 + $0x40] sm:%s917]
                %945 = vst [vmem:[%s927 + $0x40] sm:%s917] %v944
                %v946 = vld [vmem:[%s926 + $0x48] sm:%s917]
                %947 = vst [vmem:[%s927 + $0x48] sm:%s917] %v946
                %v948 = vld [vmem:[%s926 + $0x50] sm:%s917]
                %949 = vst [vmem:[%s927 + $0x50] sm:%s917] %v948
                %v950 = vld [vmem:[%s926 + $0x58] sm:%s917]
                %951 = vst [vmem:[%s927 + $0x58] sm:%s917] %v950
                %v952 = vld [vmem:[%s926 + $0x60] sm:%s917]
                %953 = vst [vmem:[%s927 + $0x60] sm:%s917] %v952
                %v954 = vld [vmem:[%s926 + $0x68] sm:%s917]
                %955 = vst [vmem:[%s927 + $0x68] sm:%s917] %v954
                %v956 = vld [vmem:[%s926 + $0x70] sm:%s917]
                %957 = vst [vmem:[%s927 + $0x70] sm:%s917] %v956
                %v958 = vld [vmem:[%s926 + $0x78] sm:%s917]
                %959 = vst [vmem:[%s927 + $0x78] sm:%s917] %v958
                %v960 = vld [vmem:[%s926 + $0x80] sm:%s917]
                %961 = vst [vmem:[%s927 + $0x80] sm:%s917] %v960
                %v962 = vld [vmem:[%s926 + $0x88] sm:%s917]
                %963 = vst [vmem:[%s927 + $0x88] sm:%s917] %v962
                %v964 = vld [vmem:[%s926 + $0x90] sm:%s917]
                %965 = vst [vmem:[%s927 + $0x90] sm:%s917] %v964
                %v966 = vld [vmem:[%s926 + $0x98] sm:%s917]
                %967 = vst [vmem:[%s927 + $0x98] sm:%s917] %v966
                %v968 = vld [vmem:[%s926 + $0xa0] sm:%s917]
                %969 = vst [vmem:[%s927 + $0xa0] sm:%s917] %v968
                %v970 = vld [vmem:[%s926 + $0xa8] sm:%s917]
                %971 = vst [vmem:[%s927 + $0xa8] sm:%s917] %v970
                %v972 = vld [vmem:[%s926 + $0xb0] sm:%s917]
                %973 = vst [vmem:[%s927 + $0xb0] sm:%s917] %v972
                %v974 = vld [vmem:[%s926 + $0xb8] sm:%s917]
                %975 = vst [vmem:[%s927 + $0xb8] sm:%s917] %v974
                %v976 = vld [vmem:[%s926 + $0xc0] sm:%s917]
                %977 = vst [vmem:[%s927 + $0xc0] sm:%s917] %v976
                %v978 = vld [vmem:[%s926 + $0xc8] sm:%s917]
                %979 = vst [vmem:[%s927 + $0xc8] sm:%s917] %v978
                %v980 = vld [vmem:[%s926 + $0xd0] sm:%s917]
                %981 = vst [vmem:[%s927 + $0xd0] sm:%s917] %v980
                %v982 = vld [vmem:[%s926 + $0xd8] sm:%s917]
                %983 = vst [vmem:[%s927 + $0xd8] sm:%s917] %v982
                %v984 = vld [vmem:[%s926 + $0xe0] sm:%s917]
                %985 = vst [vmem:[%s927 + $0xe0] sm:%s917] %v984
                %v986 = vld [vmem:[%s926 + $0xe8] sm:%s917]
                %987 = vst [vmem:[%s927 + $0xe8] sm:%s917] %v986
                %v988 = vld [vmem:[%s926 + $0xf0] sm:%s917]
                %989 = vst [vmem:[%s927 + $0xf0] sm:%s917] %v988
                %v990 = vld [vmem:[%s926 + $0xf8] sm:%s917]
                %991 = vst [vmem:[%s927 + $0xf8] sm:%s917] %v990
                %s992 = sadd.s32 1, %s925
                %p993 = scmp.ge.s32.totalorder %s992, %s918
                %s994 = scalar_select %p993, 0, %s992
                %s995 = smul.u32 %s994, 256
                %s996 = smul.u32 %s994, 256
                %s997 = scalar_lea.vmem %s897, %s995 [#allocation2]
                %s998 = scalar_lea.vmem %s908, %s996
              $region56: #{tpu_custom_call.1} parent=50 // loop_footer
                %s922 = sadd.s32 %s920, 1
              $region57: #{tpu_custom_call.1} parent=50 // loop_footer_branch
                %919 = sbr.rel target = $region53
              $region58: #{tpu_custom_call.1} parent=50 // loop_exit
                _
              %s999 = sshrl.u32 %s904, 5
              %s1000 = sand.u32 %s904, 31
              %s1001 = smul.u32 %s999, 32
              %s1002 = smul.u32 8, %s1001
              %s1003 = scalar_lea.vmem %s897, %s1002 [#allocation2]
              %s1004 = smul.u32 8, %s1001
              %s1005 = scalar_lea.vmem %s908, %s1004
              // While loop
              $region59: #{tpu_custom_call.1} parent=50 // loop_pre_header
                _
              $region60: #{tpu_custom_call.1} parent=50 // loop_header
                %s1007 = sphi 0, %s1009
                %p1008 = scmp.ge.s32.totalorder %s1007, %s1000
                %s1012 = sphi 0, %s1019
                %s1013 = sphi %s1003, %s1022
                %s1014 = sphi %s1005, %s1023
              $region61: #{tpu_custom_call.1} parent=50 // loop_header_branch
                %1011 = sbr.rel (%p1008) target = $region65
              $region62: #{tpu_custom_call.1} parent=50 // loop_body
                %v1015 = vld [vmem:[%s1013] sm:%s917]
                %1016 = vst [vmem:[%s1014] sm:%s917] %v1015
                %s1017 = sadd.s32 1, %s1012
                %p1018 = scmp.ge.s32.totalorder %s1017, %s1000
                %s1019 = scalar_select %p1018, 0, %s1017
                %s1020 = smul.u32 %s1019, 8
                %s1021 = smul.u32 %s1019, 8
                %s1022 = scalar_lea.vmem %s1003, %s1020 [#allocation2]
                %s1023 = scalar_lea.vmem %s1005, %s1021
              $region63: #{tpu_custom_call.1} parent=50 // loop_footer
                %s1009 = sadd.s32 %s1007, 1
              $region64: #{tpu_custom_call.1} parent=50 // loop_footer_branch
                %1006 = sbr.rel target = $region60
              $region65: #{tpu_custom_call.1} parent=50 // loop_exit
                _
            $region51: #{tpu_custom_call.1} parent=42 // pred_fallthru
              _
          $region43: #{tpu_custom_call.1} parent=38 // pred_fallthru
            _
          %1134 = vnop
        $region39: #{tpu_custom_call.1} parent=27 // pred_fallthru
          _
      $region28: #{tpu_custom_call.1} parent=5 // pred_fallthru
        _
      %p1135 = scmp.le.s32.totalorder 2, %s8
      // Predicated region
      $region88: #{tpu_custom_call.1} parent=5 // pred_check
        %p1136 = pneg %p1135
      $region89: #{tpu_custom_call.1} parent=5 // pred_check_branch
        %1138 = sbr.rel (%p1136) target = $region91
      $region90: #{tpu_custom_call.1} parent=5 // pred_region
        %s1139 = ssub.s32 %s8, 2
        // Predicated region
        $region92: #{tpu_custom_call.1} parent=90 // pred_check
          %p1140 = pneg %p84
        $region93: #{tpu_custom_call.1} parent=90 // pred_check_branch
          %1142 = sbr.rel (%p1140) target = $region95
        $region94: #{tpu_custom_call.1} parent=90 // pred_region
          %s1143 = sand.u32 %s69, 1
          %s1144 = sand.u32 %s69, 1
          %s1145 = smul.addr %s1144, 2560
          %s1146 = scalar_lea.vmem [#allocation2], %s1145
        $region95: #{tpu_custom_call.1} parent=90 // pred_fallthru
          _
      $region91: #{tpu_custom_call.1} parent=5 // pred_fallthru
        _
    $region6: #{tpu_custom_call.1} parent=1 // loop_footer
      %s12 = sadd.s32 1, %s8
    $region7: #{tpu_custom_call.1} parent=1 // loop_footer_branch
      %7 = sbr.rel target = $region3
    $region8: #{tpu_custom_call.1} parent=1 // loop_exit
      _

</llo_original>
